<compile_context>
chip_gen: v7x
topology: tpu7x:2x2x1
jax: 0.10.0
libtpu: 0.0.40
codegen_flags: <defaults>
</compile_context>

<pallas_src>
import functools
import math

import jax
import jax.numpy as jnp
from jax.experimental import pallas as pl
from jax.experimental.pallas import tpu as pltpu


def _mlp_kernel(x_ref, w1_ref, b1_ref, w2_ref, b2_ref, o_ref, *, inv_sqrt_h: float):
    """One (batch-tile, H-chunk) grid step of the fused two-layer MLP."""
    k = pl.program_id(1)

    # hidden chunk: relu(x_tile @ W1[:, chunk] + b1[chunk])   (MXU + VPU)
    h = jnp.dot(x_ref[...], w1_ref[...], preferred_element_type=jnp.float32)
    h = jnp.maximum(h + b1_ref[...], 0.0)

    # contribution of this H-chunk to the output tile
    contrib = jnp.dot(h.astype(w2_ref.dtype), w2_ref[...],
                      preferred_element_type=jnp.float32)

    # Output block index is (i, 0) -> constant across k, so o_ref is resident
    # across the reduction axis and serves as the f32 accumulator directly
    # (output dtype stays f32; no VMEM scratch, no zero-init, no final copy).
    @pl.when(k == 0)
    def _():
        o_ref[...] = contrib

    @pl.when(k > 0)
    def _():
        o_ref[...] += contrib

    @pl.when(k == pl.num_programs(1) - 1)
    def _():
        # scale + bias folded into the finalize step only (one VPU mul/add per tile)
        o_ref[...] = o_ref[...] * inv_sqrt_h + b2_ref[...]


def _round_up(v: int, m: int) -> int:
    return ((v + m - 1) // m) * m


def _vmem_capacity_bytes() -> int:
    """Physical VMEM per TensorCore; conservative fallback if query unavailable."""
    default = 64 * 1024 * 1024  # v7x per-TC size: safe on every generation
    try:
        info = pltpu.get_tpu_info()
        cap = getattr(info, "vmem_capacity_bytes", None)
        if cap:
            return int(cap)
    except Exception:
        pass
    return default


def _choose_tiles(N, D_in, H, d_out_pad, *, vmem_budget_bytes):
    """Pick (TILE_N, TILE_H) so the pipelined working set fits the VMEM budget.

    TILE_H must divide H exactly (padded reads on a reduction axis would corrupt
    the accumulator) and is a wide multiple of 128/256 when chunking is needed.
    TILE_N is a multiple of 8 (f32 sublane) and 256-aligned when large (MXU M
    granularity on v6e/v7x).
    """
    tile_h = H
    if H > 2048:
        for cand in (2048, 1024, 512, 256, 128):
            if H % cand == 0:
                tile_h = cand
                break
    grid_k = H // tile_h

    # Cap TILE_N so grid[0] >= 2 for larger N: lets v7x shard the batch axis
    # across its 2 TensorCores (near-free on single-core v5e/v6e).
    tile_n_cap = 1024
    if N >= 512:
        tile_n_cap = min(tile_n_cap, _round_up(pl.cdiv(N, 2), 256))
    tile_n = min(_round_up(N, 8), tile_n_cap)
    if tile_n > 256:
        tile_n = min(_round_up(tile_n, 256), tile_n_cap)

    def vmem_bytes(tn):
        # Only genuinely revolving blocks are charged a second (pipeline) buffer:
        # b2 is constant over the whole grid; W1/W2/b1 only revolve when grid_k > 1.
        k_bufs = 2 if grid_k > 1 else 1
        blocks = (2 * tn * D_in                    # x (revolves across batch tiles)
                  + k_bufs * D_in * tile_h         # W1
                  + k_bufs * tile_h                # b1
                  + k_bufs * tile_h * d_out_pad    # W2
                  + 1 * d_out_pad                  # b2 (resident)
                  + 2 * tn * d_out_pad)            # out
        interm = tn * tile_h + tn * d_out_pad      # hidden chunk + matmul result
        return 4 * (blocks + interm)               # priced conservatively as f32

    while tile_n > 8 and vmem_bytes(tile_n) > vmem_budget_bytes:
        step = 256 if tile_n > 512 else 8
        tile_n = max(8, _round_up(tile_n // 2, step))

    return tile_n, tile_h


def two_layer_net(x, w1, b1, w2, b2, *, use_bf16: bool = False):
    """Forward pass of TwoLayerNet as a single fused, batch-tiled Pallas kernel.

    Args:
      x:  (N, D_in)  float32
      w1: (D_in, H)  float32   (PyTorch linear1.weight is (H, D_in); transpose)
      b1: (H,)       float32
      w2: (H, D_out) float32   (PyTorch linear2.weight is (D_out, H); transpose)
      b2: (D_out,)   float32
      use_bf16: cast x/W1/W2 to bf16 for the bf16-native MXU (2-4x); accumulation
        stays f32.  Relaxes accuracy to ~1e-2, so it is off for the 1e-5 check.
    Returns:
      (N, D_out) float32
    """
    N, D_in = x.shape
    H = w1.shape[1]
    D_out = w2.shape[1]
    inv_sqrt_h = float(1.0 / math.sqrt(H))
    out_dtype = jnp.float32  # o_ref is the accumulator -> keep the output f32

    # Lane-dense output: pad D_out up to a multiple of 128 so the second matmul
    # fills MXU output columns and the stores are unmasked; slice after the call.
    d_out_pad = max(_round_up(D_out, 128), 128)
    if d_out_pad != D_out:
        w2 = jnp.pad(w2, ((0, 0), (0, d_out_pad - D_out)))
        b2 = jnp.pad(b2, (0, d_out_pad - D_out))

    if use_bf16:
        x = x.astype(jnp.bfloat16)
        w1 = w1.astype(jnp.bfloat16)
        w2 = w2.astype(jnp.bfloat16)

    vmem_cap = _vmem_capacity_bytes()
    vmem_budget = int(vmem_cap * 0.55)                 # ~70 MiB v5e/v6e, ~35 MiB v7x
    vmem_limit = min(int(vmem_cap * 0.75), vmem_cap - (8 << 20))

    tile_n, tile_h = _choose_tiles(N, D_in, H, d_out_pad,
                                   vmem_budget_bytes=vmem_budget)

    # Pad the batch to a TILE_N multiple: every grid step is full-rate (no ragged
    # masked DMA/stores on the last batch tile); padded rows are sliced off below.
    n_pad = _round_up(N, tile_n)
    if n_pad != N:
        x = jnp.pad(x, ((0, n_pad - N), (0, 0)))

    grid = (n_pad // tile_n, H // tile_h)

    b1_2d = b1.reshape(1, H)
    b2_2d = b2.reshape(1, d_out_pad)

    kernel = functools.partial(_mlp_kernel, inv_sqrt_h=inv_sqrt_h)

    x_isz = jnp.dtype(x.dtype).itemsize
    w_isz = jnp.dtype(w1.dtype).itemsize
    n_batch_tiles = grid[0]
    cost = pl.CostEstimate(
        flops=2 * n_pad * (D_in * H + H * d_out_pad),
        transcendentals=0,
        # weights are re-streamed from HBM once per batch tile
        bytes_accessed=(x_isz * n_pad * D_in
                        + w_isz * n_batch_tiles * (D_in * H + H * d_out_pad)
                        + 4 * (H + d_out_pad)
                        + 4 * n_pad * d_out_pad),
    )

    out = pl.pallas_call(
        kernel,
        out_shape=jax.ShapeDtypeStruct((n_pad, d_out_pad), out_dtype),
        grid_spec=pltpu.PrefetchScalarGridSpec(
            num_scalar_prefetch=0,
            grid=grid,
            in_specs=[
                pl.BlockSpec((tile_n, D_in),      lambda i, k: (i, 0)),  # x: batch tile
                pl.BlockSpec((D_in, tile_h),      lambda i, k: (0, k)),  # W1: H-chunk
                pl.BlockSpec((1, tile_h),         lambda i, k: (0, k)),  # b1
                pl.BlockSpec((tile_h, d_out_pad), lambda i, k: (k, 0)),  # W2
                pl.BlockSpec((1, d_out_pad),      lambda i, k: (0, 0)),  # b2: resident
            ],
            out_specs=pl.BlockSpec((tile_n, d_out_pad), lambda i, k: (i, 0)),
        ),
        compiler_params=pltpu.CompilerParams(
            # batch axis shards across TensorCores (v7x); H-chunk axis is a reduction.
            dimension_semantics=("parallel", "arbitrary"),
            vmem_limit_bytes=vmem_limit,
        ),
        cost_estimate=cost,
    )(x, w1, b1_2d, w2, b2_2d)

    return out[:N, :D_out]


def two_layer_net_ref(x, w1, b1, w2, b2):
    """Pure-JAX reference (mirrors the PyTorch forward exactly)."""
    h = jnp.maximum(x @ w1 + b1, 0.0)
    return h @ w2 / jnp.sqrt(jnp.float32(w1.shape[1])) + b2


if __name__ == "__main__":
    # Small shapes consistent with the module: D_in=32, H=64, D_out=16, batch=8
    N, D_in, H, D_out = 8, 32, 64, 16

    key = jax.random.PRNGKey(0)
    kx, kw1, kb1, kw2 = jax.random.split(key, 4)

    x = jax.random.normal(kx, (N, D_in), dtype=jnp.float32)

    # Deterministic parameter init (PyTorch-Linear-like uniform scaling).
    bound1 = 1.0 / math.sqrt(D_in)
    w1 = jax.random.uniform(kw1, (D_in, H), jnp.float32, -bound1, bound1)
    b1 = jax.random.uniform(kb1, (H,), jnp.float32, -bound1, bound1)
    bound2 = 1.0 / math.sqrt(H)
    w2 = jax.random.uniform(kw2, (H, D_out), jnp.float32, -bound2, bound2)
    b2 = jnp.zeros((D_out,), jnp.float32)  # self.b2 = Parameter(zeros(D_out))

    out = two_layer_net(x, w1, b1, w2, b2)
    out = jax.block_until_ready(out)

    ref = two_layer_net_ref(x, w1, b1, w2, b2)
    assert out.shape == (N, D_out)
    assert jnp.allclose(out, ref, atol=1e-5, rtol=1e-5)

    print("KERNEL_OK")
</pallas_src>

<mosaic_0001>
module attributes {stable_mosaic.version = 11 : i64} {
  func.func @_mlp_kernel(%arg0: i32, %arg1: i32, %arg2: memref<8x32xf32, #tpu.memory_space<vmem>>, %arg3: memref<32x64xf32, #tpu.memory_space<vmem>>, %arg4: memref<1x64xf32, #tpu.memory_space<vmem>>, %arg5: memref<64x128xf32, #tpu.memory_space<vmem>>, %arg6: memref<1x128xf32, #tpu.memory_space<vmem>>, %arg7: memref<8x128xf32, #tpu.memory_space<vmem>>) attributes {dimension_semantics = [#tpu.dimension_semantics<parallel>, #tpu.dimension_semantics<arbitrary>], iteration_bounds = array<i64: 1, 1>, scalar_prefetch = 0 : i64, scratch_operands = 0 : i64, tpu.core_type = #tpu.core_type<tc>, window_params = [{transform_indices = @transform_0, window_bounds = array<i64: 8, 32>}, {transform_indices = @transform_1, window_bounds = array<i64: 32, 64>}, {transform_indices = @transform_2, window_bounds = array<i64: 1, 64>}, {transform_indices = @transform_3, window_bounds = array<i64: 64, 128>}, {pipeline_mode = #tpu.pipeline_mode<synchronous>, transform_indices = @transform_4, window_bounds = array<i64: 1, 128>}, {transform_indices = @transform_5, window_bounds = array<i64: 8, 128>}]} {
    %c0 = arith.constant 0 : index
    %c0_0 = arith.constant 0 : index
    %0 = vector.load %arg2[%c0, %c0_0] : memref<8x32xf32, #tpu.memory_space<vmem>>, vector<8x32xf32>
    %c0_1 = arith.constant 0 : index
    %c0_2 = arith.constant 0 : index
    %1 = vector.load %arg3[%c0_1, %c0_2] : memref<32x64xf32, #tpu.memory_space<vmem>>, vector<32x64xf32>
    %cst = arith.constant dense<0.000000e+00> : vector<8x64xf32>
    %2 = tpu.matmul %0, %1, %cst {dimension_numbers = #tpu.dot_dimension_numbers<[1], [0], [0], [1], [0, 0, 1, 1], [], []>} : vector<8x32xf32>, vector<32x64xf32>, vector<8x64xf32> -> vector<8x64xf32>
    %c0_3 = arith.constant 0 : index
    %c0_4 = arith.constant 0 : index
    %3 = vector.load %arg4[%c0_3, %c0_4] : memref<1x64xf32, #tpu.memory_space<vmem>>, vector<1x64xf32>
    %4 = vector.broadcast %3 : vector<1x64xf32> to vector<8x64xf32>
    %5 = arith.addf %2, %4 : vector<8x64xf32>
    %cst_5 = arith.constant 0.000000e+00 : f32
    %6 = vector.broadcast %cst_5 : f32 to vector<8x64xf32>
    %7 = arith.maximumf %5, %6 : vector<8x64xf32>
    %c0_6 = arith.constant 0 : index
    %c0_7 = arith.constant 0 : index
    %8 = vector.load %arg5[%c0_6, %c0_7] : memref<64x128xf32, #tpu.memory_space<vmem>>, vector<64x128xf32>
    %cst_8 = arith.constant dense<0.000000e+00> : vector<8x128xf32>
    %9 = tpu.matmul %7, %8, %cst_8 {dimension_numbers = #tpu.dot_dimension_numbers<[1], [0], [0], [1], [0, 0, 1, 1], [], []>} : vector<8x64xf32>, vector<64x128xf32>, vector<8x128xf32> -> vector<8x128xf32>
    %c0_i32 = arith.constant 0 : i32
    %10 = arith.cmpi eq, %arg1, %c0_i32 : i32
    %11 = arith.extui %10 : i1 to i32
    %c0_i32_9 = arith.constant 0 : i32
    %12 = arith.cmpi ne, %11, %c0_i32_9 : i32
    scf.if %12 {
      %c0_14 = arith.constant 0 : index
      %c0_15 = arith.constant 0 : index
      %19 = vector.load %arg7[%c0_14, %c0_15] : memref<8x128xf32, #tpu.memory_space<vmem>>, vector<8x128xf32>
      tpu.vector_store %arg7[%c0_14, %c0_15], %9 {strides = array<i32>} : memref<8x128xf32, #tpu.memory_space<vmem>>, vector<8x128xf32>,
    } else {
    }
    %c0_i32_10 = arith.constant 0 : i32
    %13 = arith.cmpi sgt, %arg1, %c0_i32_10 : i32
    %14 = arith.extui %13 : i1 to i32
    %c0_i32_11 = arith.constant 0 : i32
    %15 = arith.cmpi ne, %14, %c0_i32_11 : i32
    scf.if %15 {
      %c0_14 = arith.constant 0 : index
      %c0_15 = arith.constant 0 : index
      %19 = vector.load %arg7[%c0_14, %c0_15] : memref<8x128xf32, #tpu.memory_space<vmem>>, vector<8x128xf32>
      %20 = arith.addf %19, %9 : vector<8x128xf32>
      %c0_16 = arith.constant 0 : index
      %c0_17 = arith.constant 0 : index
      %21 = vector.load %arg7[%c0_16, %c0_17] : memref<8x128xf32, #tpu.memory_space<vmem>>, vector<8x128xf32>
      tpu.vector_store %arg7[%c0_16, %c0_17], %20 {strides = array<i32>} : memref<8x128xf32, #tpu.memory_space<vmem>>, vector<8x128xf32>,
    } else {
    }
    %c0_i32_12 = arith.constant 0 : i32
    %16 = arith.cmpi eq, %arg1, %c0_i32_12 : i32
    %17 = arith.extui %16 : i1 to i32
    %c0_i32_13 = arith.constant 0 : i32
    %18 = arith.cmpi ne, %17, %c0_i32_13 : i32
    scf.if %18 {
      %c0_14 = arith.constant 0 : index
      %c0_15 = arith.constant 0 : index
      %19 = vector.load %arg7[%c0_14, %c0_15] : memref<8x128xf32, #tpu.memory_space<vmem>>, vector<8x128xf32>
      %cst_16 = arith.constant 1.250000e-01 : f32
      %20 = vector.broadcast %cst_16 : f32 to vector<8x128xf32>
      %21 = arith.mulf %19, %20 : vector<8x128xf32>
      %c0_17 = arith.constant 0 : index
      %c0_18 = arith.constant 0 : index
      %22 = vector.load %arg6[%c0_17, %c0_18] : memref<1x128xf32, #tpu.memory_space<vmem>>, vector<1x128xf32>
      %23 = vector.broadcast %22 : vector<1x128xf32> to vector<8x128xf32>
      %24 = arith.addf %21, %23 : vector<8x128xf32>
      %c0_19 = arith.constant 0 : index
      %c0_20 = arith.constant 0 : index
      %25 = vector.load %arg7[%c0_19, %c0_20] : memref<8x128xf32, #tpu.memory_space<vmem>>, vector<8x128xf32>
      tpu.vector_store %arg7[%c0_19, %c0_20], %24 {strides = array<i32>} : memref<8x128xf32, #tpu.memory_space<vmem>>, vector<8x128xf32>,
    } else {
    }
    return
  }
  func.func @transform_0(%arg0: i32, %arg1: i32) -> (i32, i32) {
    %c0_i32 = arith.constant 0 : i32
    %c0_i32_0 = arith.constant 0 : i32
    return %arg0, %c0_i32 : i32, i32
  }
  func.func @transform_1(%arg0: i32, %arg1: i32) -> (i32, i32) {
    %c0_i32 = arith.constant 0 : i32
    %c0_i32_0 = arith.constant 0 : i32
    return %c0_i32, %arg1 : i32, i32
  }
  func.func @transform_2(%arg0: i32, %arg1: i32) -> (i32, i32) {
    %c0_i32 = arith.constant 0 : i32
    %c0_i32_0 = arith.constant 0 : i32
    return %c0_i32, %arg1 : i32, i32
  }
  func.func @transform_3(%arg0: i32, %arg1: i32) -> (i32, i32) {
    %c0_i32 = arith.constant 0 : i32
    %c0_i32_0 = arith.constant 0 : i32
    return %arg1, %c0_i32 : i32, i32
  }
  func.func @transform_4(%arg0: i32, %arg1: i32) -> (i32, i32) {
    %c0_i32 = arith.constant 0 : i32
    %c0_i32_0 = arith.constant 0 : i32
    %c0_i32_1 = arith.constant 0 : i32
    return %c0_i32, %c0_i32_0 : i32, i32
  }
  func.func @transform_5(%arg0: i32, %arg1: i32) -> (i32, i32) {
    %c0_i32 = arith.constant 0 : i32
    %c0_i32_0 = arith.constant 0 : i32
    return %arg0, %c0_i32 : i32, i32
  }
}

</mosaic_0001>

<llo_original>
// kernel: tpu_custom_call.1
$region0: #{tpu_custom_call.1}
  #allocation0 [shape = 'u32[]', space=smem, size = 0x4, offset = 0x4, fixed_abs, tag = 'smem constant byte address 0x4 - core index']
  #allocation1 [shape = 'u32[144,128]{1,0:T(1,128)}', space=vmem, size = 0x12000, scoped, tag = 'internal scratch']
  %s0 = inlined_call_operand.hbm [shape: f32[8,32], index: 0, kind: input, shape index: {}]
  %s1 = inlined_call_operand.hbm [shape: f32[32,64], index: 1, kind: input, shape index: {}]
  %s2 = inlined_call_operand.vmem [shape: f32[1,64], index: 2, kind: input, shape index: {}]
  %s3 = inlined_call_operand.hbm [shape: f32[64,128], index: 3, kind: input, shape index: {}]
  %s4 = inlined_call_operand.vmem [shape: f32[1,128], index: 4, kind: input, shape index: {}]
  %s5 = inlined_call_operand.hbm [shape: f32[8,128], index: 5, kind: output, shape index: {}]
  %s6 = sld [smem:[#allocation0]]
  $region54: #{tpu_custom_call.1} parent=0
    _
  %s8 = ssub.s32 1, %s6
  %s9 = scalar_select 0, %s8, %s6
  $region1: #{tpu_custom_call.1} parent=0
    #allocation2 [shape = 'u8[4096]{0}', space=vmem, size = 0x1000, scoped, tag = 'input window, operand 0, single buffered']
    #allocation3 [shape = 's32[1]{0}', space=sflag, size = 0x4, scoped, tag = 'scoped memory for tpu_custom_call.1']
    #allocation4 [shape = 's32[1]{0}', space=sflag, size = 0x4, scoped, tag = 'scoped memory for tpu_custom_call.1']
    #allocation5 [shape = 'u8[16384]{0}', space=vmem, size = 0x4000, scoped, tag = 'input window, operand 1, single buffered']
    #allocation6 [shape = 's32[1]{0}', space=sflag, size = 0x4, scoped, tag = 'scoped memory for tpu_custom_call.1']
    #allocation7 [shape = 'u8[32768]{0}', space=vmem, size = 0x8000, scoped, tag = 'input window, operand 3, single buffered']
    #allocation8 [shape = 'u8[4096]{0}', space=vmem, size = 0x1000, scoped, tag = 'output window, operand 0, single buffered']
    %10 = vsyncpa [#allocation3], 0
    %11 = vsyncpa [#allocation6], 0
    %12 = vsyncpa [#allocation4], 0
    // Predicated region
    $region2: #{tpu_custom_call.1} parent=1 // pred_check
      _
    $region3: #{tpu_custom_call.1} parent=1 // pred_check_branch
      %14 = sbr.rel (0) target = $region5
    $region4: #{tpu_custom_call.1} parent=1 // pred_region
      %s16 = ssub.s32 128, 128
      %17 = vsyncadd [#allocation3], %s16
      %s19 = sshll.u32 [#allocation2], 4
      %s20 = int_to_ptr.vmem [resolvable:$true] %s19
      %22 = dma.hbm_to_vmem [thread:$0]  %s0, 128, %s20, [#allocation3]
    $region5: #{tpu_custom_call.1} parent=1 // pred_fallthru
      _
    // Predicated region
    $region6: #{tpu_custom_call.1} parent=1 // pred_check
      _
    $region7: #{tpu_custom_call.1} parent=1 // pred_check_branch
      %24 = sbr.rel (0) target = $region9
    $region8: #{tpu_custom_call.1} parent=1 // pred_region
      %s26 = ssub.s32 512, 512
      %27 = vsyncadd [#allocation6], %s26
      %s28 = sshll.u32 [#allocation5], 4
      %s29 = int_to_ptr.vmem [resolvable:$true] %s28
      %34 = dma.hbm_to_vmem [thread:$0]  %s1, 512, %s29, [#allocation6], 128, 128, 8
    $region9: #{tpu_custom_call.1} parent=1 // pred_fallthru
      _
    // Predicated region
    $region10: #{tpu_custom_call.1} parent=1 // pred_check
      _
    $region11: #{tpu_custom_call.1} parent=1 // pred_check_branch
      %36 = sbr.rel (0) target = $region13
    $region12: #{tpu_custom_call.1} parent=1 // pred_region
      _
    $region13: #{tpu_custom_call.1} parent=1 // pred_fallthru
      _
    // Predicated region
    $region14: #{tpu_custom_call.1} parent=1 // pred_check
      _
    $region15: #{tpu_custom_call.1} parent=1 // pred_check_branch
      %38 = sbr.rel (0) target = $region17
    $region16: #{tpu_custom_call.1} parent=1 // pred_region
      %s40 = ssub.s32 1024, 1024
      %41 = vsyncadd [#allocation6], %s40
      %s42 = sshll.u32 [#allocation7], 4
      %s43 = int_to_ptr.vmem [resolvable:$true] %s42
      %48 = dma.hbm_to_vmem [thread:$0]  %s3, 1024, %s43, [#allocation6], 128, 128, 8
    $region17: #{tpu_custom_call.1} parent=1 // pred_fallthru
      _
    // Predicated region
    $region18: #{tpu_custom_call.1} parent=1 // pred_check
      _
    $region19: #{tpu_custom_call.1} parent=1 // pred_check_branch
      %50 = sbr.rel (0) target = $region21
    $region20: #{tpu_custom_call.1} parent=1 // pred_region
      _
    $region21: #{tpu_custom_call.1} parent=1 // pred_fallthru
      _
    // Predicated region
    $region22: #{tpu_custom_call.1} parent=1 // pred_check
      _
    $region23: #{tpu_custom_call.1} parent=1 // pred_check_branch
      %52 = sbr.rel (0) target = $region25
    $region24: #{tpu_custom_call.1} parent=1 // pred_region
      %53 = dma.done [#allocation3], 128
    $region25: #{tpu_custom_call.1} parent=1 // pred_fallthru
      _
    // Predicated region
    $region26: #{tpu_custom_call.1} parent=1 // pred_check
      _
    $region27: #{tpu_custom_call.1} parent=1 // pred_check_branch
      %55 = sbr.rel (0) target = $region29
    $region28: #{tpu_custom_call.1} parent=1 // pred_region
      %56 = dma.done [#allocation6], 512
    $region29: #{tpu_custom_call.1} parent=1 // pred_fallthru
      _
    // Predicated region
    $region30: #{tpu_custom_call.1} parent=1 // pred_check
      _
    $region31: #{tpu_custom_call.1} parent=1 // pred_check_branch
      %58 = sbr.rel (0) target = $region33
    $region32: #{tpu_custom_call.1} parent=1 // pred_region
      %59 = dma.done [#allocation6], 1024
    $region33: #{tpu_custom_call.1} parent=1 // pred_fallthru
      _
    %v60 = vld [vmem:[#allocation2] sm:$0xff]
    %v61 = vld [vmem:[#allocation5] sm:$0xff]
    %v62 = vld [vmem:[#allocation5 + $0x8] sm:$0xff]
    %v63 = vld [vmem:[#allocation5 + $0x10] sm:$0xff]
    %v64 = vld [vmem:[#allocation5 + $0x18] sm:$0xff]
    %v65 = vld [vmem:[%s2] sm:$0x1]
    %v67 = vlaneseq
    %v68 = vshrl.u32 %v67, 7
    %v69 = vsub.s32 0, %v68
    %v70 = vrot.slane %v65, %v69
    %vm72 = vcmask 261120
    %v74 = vsel %vm72, %v60, 0
    %76 = vmatprep.subr.mxu0 0.0
    %77 = vmatpush1.msra.mxu0 %v61
    %78 = vmatprep.subr.mxu0 0.0
    %79 = vmatpush1.msra.mxu0 %v62
    %80 = vmatprep.subr.mxu0 0.0
    %81 = vmatpush1.msra.mxu0 %v63
    %82 = vmatprep.subr.mxu0 0.0
    %83 = vmatpush1.msra.mxu0 %v64
    %84 = vmatprep.subr.mxu0 0.0
    %85 = vmatpush1.msra.mxu0 0.0
    %86 = vmatprep.subr.mxu0 0.0
    %87 = vmatpush1.msra.mxu0 0.0
    %88 = vmatprep.subr.mxu0 0.0
    %89 = vmatpush1.msra.mxu0 0.0
    %90 = vmatprep.subr.mxu0 0.0
    %91 = vmatpush1.msra.mxu0 0.0
    %92 = vmatprep.subr.mxu0 0.0
    %93 = vmatpush1.msra.mxu0 0.0
    %94 = vmatprep.subr.mxu0 0.0
    %95 = vmatpush1.msra.mxu0 0.0
    %96 = vmatprep.subr.mxu0 0.0
    %97 = vmatpush1.msra.mxu0 0.0
    %98 = vmatprep.subr.mxu0 0.0
    %99 = vmatpush1.msra.mxu0 0.0
    %100 = vmatprep.subr.mxu0 0.0
    %101 = vmatpush1.msra.mxu0 0.0
    %102 = vmatprep.subr.mxu0 0.0
    %103 = vmatpush1.msra.mxu0 0.0
    %104 = vmatprep.subr.mxu0 0.0
    %105 = vmatpush1.msra.mxu0 0.0
    %106 = vmatprep.subr.mxu0 0.0
    %107 = vmatpush1.msra.mxu0 0.0
    %108 = vmatprep.subr.mxu0 0.0
    %109 = vmatpush1.msra.mxu0 0.0
    %110 = vmatprep.subr.mxu0 0.0
    %111 = vmatpush1.msra.mxu0 0.0
    %112 = vmatprep.subr.mxu0 0.0
    %113 = vmatpush1.msra.mxu0 0.0
    %114 = vmatprep.subr.mxu0 0.0
    %115 = vmatpush1.msra.mxu0 0.0
    %116 = vmatprep.subr.mxu0 0.0
    %117 = vmatpush1.msra.mxu0 0.0
    %118 = vmatprep.subr.mxu0 0.0
    %119 = vmatpush1.msra.mxu0 0.0
    %120 = vmatprep.subr.mxu0 0.0
    %121 = vmatpush1.msra.mxu0 0.0
    %122 = vmatprep.subr.mxu0 0.0
    %123 = vmatpush1.msra.mxu0 0.0
    %124 = vmatprep.subr.mxu0 0.0
    %125 = vmatpush1.msra.mxu0 0.0
    %126 = vmatprep.subr.mxu0 0.0
    %127 = vmatpush1.msra.mxu0 0.0
    %128 = vmatprep.subr.mxu0 0.0
    %129 = vmatpush1.msra.mxu0 0.0
    %130 = vmatprep.subr.mxu0 0.0
    %131 = vmatpush1.msra.mxu0 0.0
    %132 = vmatprep.subr.mxu0 0.0
    %133 = vmatpush1.msra.mxu0 0.0
    %134 = vmatprep.subr.mxu0 0.0
    %135 = vmatpush1.msra.mxu0 0.0
    %136 = vmatprep.subr.mxu0 0.0
    %137 = vmatpush1.msra.mxu0 0.0
    %138 = vmatprep.subr.mxu0 0.0
    %139 = vmatpush1.msra.mxu0 0.0
    %140 = vmatprep.mubr.f32.mxu0 0.0
    %141 = vmatmul.mubr.f32.gmra.mrb[0].mxu0 %v74
    %v142 = vpop.f32.mrb[0].mxu0
    %v143 = vadd.f32 %v70, %v142
    %v144 = vpop.f32.mrb[0].mxu0
    %145 = vdwg.mxu0
    %v146 = vmax.f32 %v143, 0.0
    %v147 = vld [vmem:[#allocation7] sm:$0xff]
    %v148 = vld [vmem:[#allocation7 + $0x8] sm:$0xff]
    %v149 = vld [vmem:[#allocation7 + $0x10] sm:$0xff]
    %v150 = vld [vmem:[#allocation7 + $0x18] sm:$0xff]
    %v151 = vld [vmem:[#allocation7 + $0x20] sm:$0xff]
    %v152 = vld [vmem:[#allocation7 + $0x28] sm:$0xff]
    %v153 = vld [vmem:[#allocation7 + $0x30] sm:$0xff]
    %v154 = vld [vmem:[#allocation7 + $0x38] sm:$0xff]
    %vm155 = vcmask 523264
    %v157 = vsel %vm155, %v146, 0
    %159 = vmatprep.subr.mxu0 0.0
    %160 = vmatpush1.msra.mxu0 %v147
    %161 = vmatprep.subr.mxu0 0.0
    %162 = vmatpush1.msra.mxu0 %v148
    %163 = vmatprep.subr.mxu0 0.0
    %164 = vmatpush1.msra.mxu0 %v149
    %165 = vmatprep.subr.mxu0 0.0
    %166 = vmatpush1.msra.mxu0 %v150
    %167 = vmatprep.subr.mxu0 0.0
    %168 = vmatpush1.msra.mxu0 %v151
    %169 = vmatprep.subr.mxu0 0.0
    %170 = vmatpush1.msra.mxu0 %v152
    %171 = vmatprep.subr.mxu0 0.0
    %172 = vmatpush1.msra.mxu0 %v153
    %173 = vmatprep.subr.mxu0 0.0
    %174 = vmatpush1.msra.mxu0 %v154
    %175 = vmatprep.subr.mxu0 0.0
    %176 = vmatpush1.msra.mxu0 0.0
    %177 = vmatprep.subr.mxu0 0.0
    %178 = vmatpush1.msra.mxu0 0.0
    %179 = vmatprep.subr.mxu0 0.0
    %180 = vmatpush1.msra.mxu0 0.0
    %181 = vmatprep.subr.mxu0 0.0
    %182 = vmatpush1.msra.mxu0 0.0
    %183 = vmatprep.subr.mxu0 0.0
    %184 = vmatpush1.msra.mxu0 0.0
    %185 = vmatprep.subr.mxu0 0.0
    %186 = vmatpush1.msra.mxu0 0.0
    %187 = vmatprep.subr.mxu0 0.0
    %188 = vmatpush1.msra.mxu0 0.0
    %189 = vmatprep.subr.mxu0 0.0
    %190 = vmatpush1.msra.mxu0 0.0
    %191 = vmatprep.subr.mxu0 0.0
    %192 = vmatpush1.msra.mxu0 0.0
    %193 = vmatprep.subr.mxu0 0.0
    %194 = vmatpush1.msra.mxu0 0.0
    %195 = vmatprep.subr.mxu0 0.0
    %196 = vmatpush1.msra.mxu0 0.0
    %197 = vmatprep.subr.mxu0 0.0
    %198 = vmatpush1.msra.mxu0 0.0
    %199 = vmatprep.subr.mxu0 0.0
    %200 = vmatpush1.msra.mxu0 0.0
    %201 = vmatprep.subr.mxu0 0.0
    %202 = vmatpush1.msra.mxu0 0.0
    %203 = vmatprep.subr.mxu0 0.0
    %204 = vmatpush1.msra.mxu0 0.0
    %205 = vmatprep.subr.mxu0 0.0
    %206 = vmatpush1.msra.mxu0 0.0
    %207 = vmatprep.subr.mxu0 0.0
    %208 = vmatpush1.msra.mxu0 0.0
    %209 = vmatprep.subr.mxu0 0.0
    %210 = vmatpush1.msra.mxu0 0.0
    %211 = vmatprep.subr.mxu0 0.0
    %212 = vmatpush1.msra.mxu0 0.0
    %213 = vmatprep.subr.mxu0 0.0
    %214 = vmatpush1.msra.mxu0 0.0
    %215 = vmatprep.subr.mxu0 0.0
    %216 = vmatpush1.msra.mxu0 0.0
    %217 = vmatprep.subr.mxu0 0.0
    %218 = vmatpush1.msra.mxu0 0.0
    %219 = vmatprep.subr.mxu0 0.0
    %220 = vmatpush1.msra.mxu0 0.0
    %221 = vmatprep.subr.mxu0 0.0
    %222 = vmatpush1.msra.mxu0 0.0
    %223 = vmatprep.mubr.f32.mxu0 0.0
    %224 = vmatmul.mubr.f32.gmra.mrb[0].mxu0 %v157
    %v225 = vpop.f32.mrb[0].mxu0
    %v226 = vadd.f32 0.0, %v225
    %v227 = vpop.f32.mrb[0].mxu0
    %228 = vdwg.mxu0
    %p229 = scmp.eq.s32.totalorder 0, 0
    // Predicated region
    $region34: #{tpu_custom_call.1} parent=1 // pred_check
      %p230 = pneg %p229
    $region35: #{tpu_custom_call.1} parent=1 // pred_check_branch
      %232 = sbr.rel (%p230) target = $region37
    $region36: #{tpu_custom_call.1} parent=1 // pred_region
      %233 = vst [vmem:[#allocation8] sm:$0xff] %v226
    $region37: #{tpu_custom_call.1} parent=1 // pred_fallthru
      _
    %p234 = scmp.gt.s32.totalorder 0, 0
    // Predicated region
    $region38: #{tpu_custom_call.1} parent=1 // pred_check
      %p235 = pneg %p234
    $region39: #{tpu_custom_call.1} parent=1 // pred_check_branch
      %237 = sbr.rel (%p235) target = $region41
    $region40: #{tpu_custom_call.1} parent=1 // pred_region
      %v238 = vld [vmem:[#allocation8] sm:$0xff]
      %v239 = vadd.f32 %v238, %v226
      %240 = vst [vmem:[#allocation8] sm:$0xff] %v239
    $region41: #{tpu_custom_call.1} parent=1 // pred_fallthru
      _
    // Predicated region
    $region42: #{tpu_custom_call.1} parent=1 // pred_check
      %p241 = pneg %p229
    $region43: #{tpu_custom_call.1} parent=1 // pred_check_branch
      %243 = sbr.rel (%p241) target = $region45
    $region44: #{tpu_custom_call.1} parent=1 // pred_region
      %v244 = vld [vmem:[#allocation8] sm:$0xff]
      %v245 = vmul.f32 %v244, 0.125
      %v246 = vld [vmem:[%s4] sm:$0x1]
      %v248 = vlaneseq
      %v249 = vshrl.u32 %v248, 7
      %v250 = vsub.s32 0, %v249
      %v251 = vrot.slane %v246, %v250
      %v253 = vadd.f32 %v245, %v251
      %254 = vst [vmem:[#allocation8] sm:$0xff] %v253
    $region45: #{tpu_custom_call.1} parent=1 // pred_fallthru
      _
    // Predicated region
    $region46: #{tpu_custom_call.1} parent=1 // pred_check
      _
    $region47: #{tpu_custom_call.1} parent=1 // pred_check_branch
      %256 = sbr.rel (0) target = $region49
    $region48: #{tpu_custom_call.1} parent=1 // pred_region
      %s258 = ssub.s32 128, 128
      %259 = vsyncadd [#allocation4], %s258
      %s261 = sshll.u32 [#allocation8], 4
      %s262 = int_to_ptr.vmem [resolvable:$true] %s261
      %264 = dma.vmem_to_hbm [thread:$0]  %s262, 128, %s5, [#allocation4]
    $region49: #{tpu_custom_call.1} parent=1 // pred_fallthru
      _
    // Predicated region
    $region50: #{tpu_custom_call.1} parent=1 // pred_check
      _
    $region51: #{tpu_custom_call.1} parent=1 // pred_check_branch
      %266 = sbr.rel (0) target = $region53
    $region52: #{tpu_custom_call.1} parent=1 // pred_region
      %267 = dma.done [#allocation4], 128
    $region53: #{tpu_custom_call.1} parent=1 // pred_fallthru
      _
    %268 = vsyncpa [#allocation3], 1
    %269 = vsyncpa [#allocation6], 1
    %270 = vsyncpa [#allocation4], 1

</llo_original>
